<compile_context>
chip_gen: v7x
topology: tpu7x:2x2x1
jax: 0.10.0
libtpu: 0.0.40
codegen_flags: <defaults>
</compile_context>

<pallas_src>
import functools
import math

import jax
import jax.numpy as jnp
from jax.experimental import pallas as pl
from jax.experimental.pallas import tpu as pltpu


def _round_up(x, m):
    return ((x + m - 1) // m) * m


def _binding_kernel(x_ref, w_ref, b_ref, pot_ref, *, hp, t_valid, inv_sqrt_h):
    """One batch tile: fused key/query projection + adjacent-token binding.

    x_ref:   (TB, Tp, D)   input tokens (stored dtype; cast to MXU dtype here)
    w_ref:   (D, 2*Hp)     [wk.T | 0 | wq.T | 0], 128-lane-aligned halves
    b_ref:   (1, 2*Hp)     [bk | 0 | bq | 0], f32
    pot_ref: (TB, W)       sigmoid binding potential, lane-dense (W % 128 == 0)
    """
    tb, t_pad, d = x_ref.shape

    w = w_ref[...]                          # resident across grid steps
    x = x_ref[...]
    if x.dtype != w.dtype:
        x = x.astype(w.dtype)               # in-VMEM cast; no extra HBM traffic

    # One wide MXU matmul produces both projections; f32 accumulation.
    # Tp % 8 == 0 (guaranteed by the wrapper) => reshapes are layout views.
    y = jnp.dot(x.reshape(tb * t_pad, d), w, preferred_element_type=jnp.float32)
    y = (y + b_ref[...]).reshape(tb, t_pad, 2 * hp)

    # Adjacent-token pairing.  The lane split at hp is 128-aligned, and the
    # zero-padded lanes [H, Hp) of both halves contribute 0 to the reduction.
    keys = y[:, :t_valid, :hp]              # == bind_key(x[:, :-1])
    queries = y[:, 1:t_valid + 1, hp:]      # == bind_query(x[:, 1:])

    s = jnp.sum(keys * queries, axis=-1) * inv_sqrt_h        # (TB, T-1), f32
    pot = jax.nn.sigmoid(s)

    w_out = pot_ref.shape[-1]
    if w_out == t_valid:
        pot_ref[...] = pot
    else:
        # Lane-dense block: one dense full-width store + a tiny sub-vreg store
        # for the valid columns; the HBM writeback is a single dense DMA.
        pot_ref[...] = jnp.zeros((tb, w_out), jnp.float32)
        pot_ref[:, :t_valid] = pot


def fuse_binding_params(params, matmul_dtype=jnp.bfloat16):
    """Pre-fuse bind_key / bind_query into one lane-padded (D, 2*Hp) weight.

    Keys occupy lanes [0, H) of the first 128-aligned lane group, queries
    lanes [Hp, Hp+H) of the second; padded columns are zero so the kernel's
    full-width reduction is exact.  Done once, outside the per-call path.

    matmul_dtype defaults to bf16 (MXU-native on v5e/v6e/v7x; the kernel is
    HBM-bound at small/medium D).  Pass jnp.float32 for tight parity with the
    PyTorch reference (bf16 can flip mask bits for potentials very near the
    threshold).  The bias stays f32 (added after f32 accumulation).
    """
    wk = jnp.asarray(params["wk"], jnp.float32)    # (H, D) torch Linear layout
    wq = jnp.asarray(params["wq"], jnp.float32)    # (H, D)
    bk = jnp.asarray(params["bk"], jnp.float32)    # (H,)
    bq = jnp.asarray(params["bq"], jnp.float32)    # (H,)
    h, d = wk.shape
    hp = _round_up(max(h, 1), 128)
    w = jnp.zeros((d, 2 * hp), jnp.float32)
    w = w.at[:, :h].set(wk.T).at[:, hp:hp + h].set(wq.T)
    b = jnp.zeros((1, 2 * hp), jnp.float32)
    b = b.at[:, :h].set(bk).at[:, hp:hp + h].set(bq)
    return w.astype(matmul_dtype), b


def _pick_block_b(b, per_row_bytes, fixed_bytes, vmem_budget, min_grid_steps):
    """Largest batch tile (the full batch, or a multiple of 8) that fits the
    VMEM budget, additionally capped so the grid has >= min_grid_steps steps
    when the batch allows it (v7x has 2 TensorCores; also enables DMA/compute
    pipelining).  Tiny batches (<= 8) run as a single block."""
    if b <= 8:
        return b
    avail = max(0, vmem_budget - fixed_bytes)
    tb_fit = max(8, avail // max(1, per_row_bytes))
    tb_split = max(8, -(-b // min_grid_steps))
    tb = min(b, tb_fit, tb_split)
    if tb >= b:
        return b
    return max(8, (tb // 8) * 8)


def binding_field_forward(x, w_fused, b_fused, *, bind_threshold=0.5,
                          block_b=None, vmem_budget_bytes=28 << 20,
                          min_grid_steps=2):
    """Forward pass of BindingField.

    Args:
      x:        (B, T, D).  Read from HBM in its stored dtype (store bf16
                upstream for minimal HBM traffic); cast to w_fused.dtype inside
                the kernel (VMEM), never round-tripped through HBM.
      w_fused:  (D, 2*Hp) lane-padded fused weight from fuse_binding_params().
      b_fused:  (1, 2*Hp) fused f32 bias.
      bind_threshold: python float threshold.
    Returns:
      (binding_mask (B, T) f32, binding_potential (B, T-1) f32)
    """
    B, T, D = x.shape
    H = D // 2
    hp = w_fused.shape[1] // 2

    if T <= 1:
        return (jnp.zeros((B, T), jnp.float32),
                jnp.zeros((B, max(T - 1, 0)), jnp.float32))

    if x.dtype == jnp.float64:              # TPU has no f64 path; be explicit
        x = x.astype(jnp.float32)

    # Pad T to a multiple of 8 so the block's sublane dim obeys the (8,128)
    # rule and the in-kernel reshapes are views.  Skipped when already aligned
    # (one extra HBM pass over x when taken).
    t_pad = _round_up(T, 8)
    if t_pad != T:
        x = jnp.pad(x, ((0, 0), (0, t_pad - T), (0, 0)))

    t_valid = T - 1
    w_out = _round_up(max(t_valid, 1), 128)      # lane-dense output width

    x_item = x.dtype.itemsize
    w_item = w_fused.dtype.itemsize
    w_bytes = D * 2 * hp * w_item
    # TODO(synk): for very large D (resident D x 2Hp weight > ~1/4 of the VMEM
    # budget) add a second grid axis tiling the 2Hp (N) dimension with
    # double-buffered weight streaming instead of keeping the weight resident.
    if w_bytes > vmem_budget_bytes // 4:
        raise NotImplementedError(
            f"Resident fused weight needs {w_bytes >> 20} MiB of VMEM for "
            f"D={D}; add N-dimension weight tiling for this size.")

    per_row_bytes = (2 * t_pad * D * x_item       # double-buffered x rows
                     + t_pad * 2 * hp * 4         # f32 matmul output y
                     + 3 * t_pad * hp * 4         # keys / queries / product
                     + 2 * w_out * 4)             # double-buffered out rows
    tb = block_b if block_b is not None else _pick_block_b(
        B, per_row_bytes, w_bytes, vmem_budget_bytes, min_grid_steps)
    grid = (pl.cdiv(B, tb),)

    footprint = w_bytes + tb * per_row_bytes
    vmem_limit = int(min(48 << 20, max(24 << 20, 2 * footprint)))

    kernel = functools.partial(_binding_kernel, hp=hp, t_valid=t_valid,
                               inv_sqrt_h=1.0 / math.sqrt(H))

    cost = pl.CostEstimate(
        flops=2 * B * t_pad * D * (2 * hp) + 3 * B * t_valid * hp,
        transcendentals=B * t_valid,
        bytes_accessed=(x_item * B * t_pad * D + w_bytes
                        + 4 * 2 * hp + 4 * B * w_out),
    )

    pot_padded = pl.pallas_call(
        kernel,
        out_shape=jax.ShapeDtypeStruct((B, w_out), jnp.float32),
        grid_spec=pltpu.PrefetchScalarGridSpec(
            num_scalar_prefetch=0,
            grid=grid,
            in_specs=[
                pl.BlockSpec((tb, t_pad, D), lambda i: (i, 0, 0)),   # x tile
                pl.BlockSpec((D, 2 * hp), lambda i: (0, 0)),         # weight (resident)
                pl.BlockSpec((1, 2 * hp), lambda i: (0, 0)),         # bias (resident)
            ],
            out_specs=pl.BlockSpec((tb, w_out), lambda i: (i, 0)),
        ),
        compiler_params=pltpu.CompilerParams(
            dimension_semantics=("parallel",),
            vmem_limit_bytes=vmem_limit,
        ),
        cost_estimate=cost,
    )(x, w_fused, b_fused)

    binding_potential = pot_padded[:, :t_valid]
    # Tiny (B, T) post-processing stays in plain JAX (fuses with neighbors).
    mask_tail = (binding_potential > bind_threshold).astype(jnp.float32)
    binding_mask = jnp.concatenate(
        [jnp.zeros((B, 1), jnp.float32), mask_tail], axis=1)
    return binding_mask, binding_potential


def init_binding_field_params(key, dim):
    """Deterministic init matching nn.Linear default (uniform +/- 1/sqrt(fan_in))."""
    h = dim // 2
    k1, k2, k3, k4 = jax.random.split(key, 4)
    bound = 1.0 / math.sqrt(dim)
    return {
        "wk": jax.random.uniform(k1, (h, dim), jnp.float32, -bound, bound),
        "bk": jax.random.uniform(k2, (h,), jnp.float32, -bound, bound),
        "wq": jax.random.uniform(k3, (h, dim), jnp.float32, -bound, bound),
        "bq": jax.random.uniform(k4, (h,), jnp.float32, -bound, bound),
    }
    # NOTE: chunk_energy_module exists in __init__ but is never used in
    # forward(), so it is intentionally not materialized here.


def _reference_forward(x, params, thr=0.5):
    B, T, D = x.shape
    keys = x[:, :-1] @ params["wk"].T + params["bk"]
    queries = x[:, 1:] @ params["wq"].T + params["bq"]
    pot = jax.nn.sigmoid((keys * queries).sum(-1) / math.sqrt(D // 2))
    mask = jnp.concatenate(
        [jnp.zeros((B, 1), jnp.float32), (pot > thr).astype(jnp.float32)],
        axis=1)
    return mask, pot


if __name__ == "__main__":
    B, T, D = 2, 8, 32
    key = jax.random.PRNGKey(0)
    kx, kp = jax.random.split(key)
    x = jax.random.normal(kx, (B, T, D), jnp.float32)
    params = init_binding_field_params(kp, D)

    ref_mask, ref_pot = _reference_forward(x, params, 0.5)

    # Default path: bf16 MXU inputs, f32 accumulate / reduce / sigmoid.
    w_bf16, b_fused = fuse_binding_params(params)              # bf16 weight
    fwd = jax.jit(functools.partial(binding_field_forward, bind_threshold=0.5))
    mask_bf16, pot_bf16 = fwd(x, w_bf16, b_fused)
    jax.block_until_ready((mask_bf16, pot_bf16))
    assert mask_bf16.shape == (B, T)
    assert pot_bf16.shape == (B, T - 1)
    assert jnp.allclose(pot_bf16, ref_pot, atol=2e-2)
    assert jnp.array_equal(mask_bf16[:, 1:],
                           (pot_bf16 > 0.5).astype(jnp.float32))
    assert jnp.all(mask_bf16[:, 0] == 0)

    # f32 path: tight parity with the reference.
    w_f32, b_f32 = fuse_binding_params(params, matmul_dtype=jnp.float32)
    mask_f32, pot_f32 = jax.jit(binding_field_forward)(x, w_f32, b_f32)
    jax.block_until_ready((mask_f32, pot_f32))
    assert jnp.allclose(pot_f32, ref_pot, atol=5e-3)
    assert jnp.array_equal(mask_f32[:, 1:],
                           (pot_f32 > 0.5).astype(jnp.float32))
    assert jnp.all(mask_f32[:, 0] == 0)

    print("KERNEL_OK")
</pallas_src>

<mosaic_0001>
module attributes {stable_mosaic.version = 11 : i64} {
  func.func @_binding_kernel(%arg0: i32, %arg1: memref<2x8x32xf32, #tpu.memory_space<vmem>>, %arg2: memref<32x256xbf16, #tpu.memory_space<vmem>>, %arg3: memref<1x256xf32, #tpu.memory_space<vmem>>, %arg4: memref<2x128xf32, #tpu.memory_space<vmem>>) attributes {dimension_semantics = [#tpu.dimension_semantics<parallel>], iteration_bounds = array<i64: 1>, scalar_prefetch = 0 : i64, scratch_operands = 0 : i64, tpu.core_type = #tpu.core_type<tc>, window_params = [{transform_indices = @transform_0, window_bounds = array<i64: 2, 8, 32>}, {pipeline_mode = #tpu.pipeline_mode<synchronous>, transform_indices = @transform_1, window_bounds = array<i64: 32, 256>}, {pipeline_mode = #tpu.pipeline_mode<synchronous>, transform_indices = @transform_2, window_bounds = array<i64: 1, 256>}, {transform_indices = @transform_3, window_bounds = array<i64: 2, 128>}]} {
    %c0 = arith.constant 0 : index
    %c0_0 = arith.constant 0 : index
    %0 = vector.load %arg2[%c0, %c0_0] : memref<32x256xbf16, #tpu.memory_space<vmem>>, vector<32x256xbf16>
    %c0_1 = arith.constant 0 : index
    %c0_2 = arith.constant 0 : index
    %c0_3 = arith.constant 0 : index
    %1 = vector.load %arg1[%c0_1, %c0_2, %c0_3] : memref<2x8x32xf32, #tpu.memory_space<vmem>>, vector<2x8x32xf32>
    %2 = arith.truncf %1 : vector<2x8x32xf32> to vector<2x8x32xbf16>
    %3 = vector.shape_cast %2 : vector<2x8x32xbf16> to vector<16x32xbf16>
    %cst = arith.constant dense<0.000000e+00> : vector<16x256xf32>
    %4 = tpu.matmul %3, %0, %cst {dimension_numbers = #tpu.dot_dimension_numbers<[1], [0], [0], [1], [0, 0, 1, 1], [], []>} : vector<16x32xbf16>, vector<32x256xbf16>, vector<16x256xf32> -> vector<16x256xf32>
    %c0_4 = arith.constant 0 : index
    %c0_5 = arith.constant 0 : index
    %5 = vector.load %arg3[%c0_4, %c0_5] : memref<1x256xf32, #tpu.memory_space<vmem>>, vector<1x256xf32>
    %6 = vector.broadcast %5 : vector<1x256xf32> to vector<16x256xf32>
    %7 = arith.addf %4, %6 : vector<16x256xf32>
    %8 = vector.shape_cast %7 : vector<16x256xf32> to vector<2x8x256xf32>
    %9 = vector.extract_strided_slice %8 {offsets = [0, 0, 0], sizes = [2, 7, 128], strides = [1, 1, 1]} : vector<2x8x256xf32> to vector<2x7x128xf32>
    %10 = vector.extract_strided_slice %8 {offsets = [0, 1, 128], sizes = [2, 7, 128], strides = [1, 1, 1]} : vector<2x8x256xf32> to vector<2x7x128xf32>
    %11 = arith.mulf %9, %10 : vector<2x7x128xf32>
    %cst_6 = arith.constant dense<0.000000e+00> : vector<2x7xf32>
    %12 = vector.multi_reduction <add>, %11, %cst_6 [2] : vector<2x7x128xf32> to vector<2x7xf32>
    %cst_7 = arith.constant 2.500000e-01 : f32
    %13 = vector.broadcast %cst_7 : f32 to vector<2x7xf32>
    %14 = arith.mulf %12, %13 : vector<2x7xf32>
    %15 = arith.negf %14 : vector<2x7xf32>
    %16 = math.exp %15 : vector<2x7xf32>
    %cst_8 = arith.constant 1.000000e+00 : f32
    %17 = vector.broadcast %cst_8 : f32 to vector<2x7xf32>
    %18 = arith.addf %17, %16 : vector<2x7xf32>
    %19 = arith.divf %17, %18 : vector<2x7xf32>
    %cst_9 = arith.constant 0.000000e+00 : f32
    %20 = vector.broadcast %cst_9 : f32 to vector<2x128xf32>
    %c0_10 = arith.constant 0 : index
    %c0_11 = arith.constant 0 : index
    %21 = vector.load %arg4[%c0_10, %c0_11] : memref<2x128xf32, #tpu.memory_space<vmem>>, vector<2x128xf32>
    tpu.vector_store %arg4[%c0_10, %c0_11], %20 {strides = array<i32>} : memref<2x128xf32, #tpu.memory_space<vmem>>, vector<2x128xf32>,
    %c0_12 = arith.constant 0 : index
    %c0_13 = arith.constant 0 : index
    %22 = vector.load %arg4[%c0_12, %c0_13] : memref<2x128xf32, #tpu.memory_space<vmem>>, vector<2x7xf32>
    tpu.vector_store %arg4[%c0_12, %c0_13], %19 {strides = array<i32>} : memref<2x128xf32, #tpu.memory_space<vmem>>, vector<2x7xf32>,
    return
  }
  func.func @transform_0(%arg0: i32) -> (i32, i32, i32) {
    %c0_i32 = arith.constant 0 : i32
    %c0_i32_0 = arith.constant 0 : i32
    %c0_i32_1 = arith.constant 0 : i32
    return %arg0, %c0_i32, %c0_i32_0 : i32, i32, i32
  }
  func.func @transform_1(%arg0: i32) -> (i32, i32) {
    %c0_i32 = arith.constant 0 : i32
    %c0_i32_0 = arith.constant 0 : i32
    %c0_i32_1 = arith.constant 0 : i32
    return %c0_i32, %c0_i32_0 : i32, i32
  }
  func.func @transform_2(%arg0: i32) -> (i32, i32) {
    %c0_i32 = arith.constant 0 : i32
    %c0_i32_0 = arith.constant 0 : i32
    %c0_i32_1 = arith.constant 0 : i32
    return %c0_i32, %c0_i32_0 : i32, i32
  }
  func.func @transform_3(%arg0: i32) -> (i32, i32) {
    %c0_i32 = arith.constant 0 : i32
    %c0_i32_0 = arith.constant 0 : i32
    return %arg0, %c0_i32 : i32, i32
  }
}

</mosaic_0001>

<llo_original>
// kernel: binding_field_forward.1
$region0: #{binding_field_forward.1}
  #allocation0 [shape = 'u32[]', space=smem, size = 0x4, offset = 0x4, fixed_abs, tag = 'smem constant byte address 0x4 - core index']
  #allocation1 [shape = 'u32[144,128]{1,0:T(1,128)}', space=vmem, size = 0x12000, scoped, tag = 'internal scratch']
  %s0 = inlined_call_operand.hbm [shape: f32[2,8,32], index: 0, kind: input, shape index: {}]
  %s1 = inlined_call_operand.hbm [shape: bf16[32,256], index: 1, kind: input, shape index: {}]
  %s2 = inlined_call_operand.vmem [shape: f32[1,256], index: 2, kind: input, shape index: {}]
  %s3 = inlined_call_operand.vmem [shape: f32[2,128], index: 3, kind: output, shape index: {}]
  %s4 = sld [smem:[#allocation0]]
  $region30: #{binding_field_forward.1} parent=0
    _
  %s6 = ssub.s32 1, %s4
  %s7 = scalar_select 0, %s6, %s4
  $region1: #{binding_field_forward.1} parent=0
    #allocation2 [shape = 'u8[8192]{0}', space=vmem, size = 0x2000, scoped, tag = 'input window, operand 0, single buffered']
    #allocation3 [shape = 's32[1]{0}', space=sflag, size = 0x4, scoped, tag = 'scoped memory for binding_field_forward.1']
    #allocation4 [shape = 'u8[16384]{0}', space=vmem, size = 0x4000, scoped, tag = 'input window, operand 1, single buffered']
    #allocation5 [shape = 's32[1]{0}', space=sflag, size = 0x4, scoped, tag = 'scoped memory for binding_field_forward.1']
    %8 = vsyncpa [#allocation3], 0
    %9 = vsyncpa [#allocation5], 0
    // Predicated region
    $region2: #{binding_field_forward.1} parent=1 // pred_check
      _
    $region3: #{binding_field_forward.1} parent=1 // pred_check_branch
      %11 = sbr.rel (0) target = $region5
    $region4: #{binding_field_forward.1} parent=1 // pred_region
      %s13 = ssub.s32 256, 256
      %14 = vsyncadd [#allocation3], %s13
      %s15 = sshll.u32 [#allocation2], 4
      %s16 = int_to_ptr.vmem [resolvable:$true] %s15
      %21 = dma.hbm_to_vmem [thread:$0]  %s0, 256, %s16, [#allocation3], 128, 128, 8
    $region5: #{binding_field_forward.1} parent=1 // pred_fallthru
      _
    // Predicated region
    $region6: #{binding_field_forward.1} parent=1 // pred_check
      _
    $region7: #{binding_field_forward.1} parent=1 // pred_check_branch
      %23 = sbr.rel (0) target = $region9
    $region8: #{binding_field_forward.1} parent=1 // pred_region
      %s25 = ssub.s32 512, 512
      %26 = vsyncadd [#allocation5], %s25
      %s27 = sshll.u32 [#allocation4], 4
      %s28 = int_to_ptr.vmem [resolvable:$true] %s27
      %33 = dma.hbm_to_vmem [thread:$0]  %s1, 512, %s28, [#allocation5], 128, 128, 8
    $region9: #{binding_field_forward.1} parent=1 // pred_fallthru
      _
    // Predicated region
    $region10: #{binding_field_forward.1} parent=1 // pred_check
      _
    $region11: #{binding_field_forward.1} parent=1 // pred_check_branch
      %35 = sbr.rel (0) target = $region13
    $region12: #{binding_field_forward.1} parent=1 // pred_region
      _
    $region13: #{binding_field_forward.1} parent=1 // pred_fallthru
      _
    // Predicated region
    $region14: #{binding_field_forward.1} parent=1 // pred_check
      _
    $region15: #{binding_field_forward.1} parent=1 // pred_check_branch
      %37 = sbr.rel (0) target = $region17
    $region16: #{binding_field_forward.1} parent=1 // pred_region
      %38 = dma.done [#allocation3], 256
    $region17: #{binding_field_forward.1} parent=1 // pred_fallthru
      _
    // Predicated region
    $region18: #{binding_field_forward.1} parent=1 // pred_check
      _
    $region19: #{binding_field_forward.1} parent=1 // pred_check_branch
      %40 = sbr.rel (0) target = $region21
    $region20: #{binding_field_forward.1} parent=1 // pred_region
      %41 = dma.done [#allocation5], 512
    $region21: #{binding_field_forward.1} parent=1 // pred_fallthru
      _
    %v43 = vld [vmem:[#allocation4] sm:$0xff]
    %v44 = vld [vmem:[#allocation4 + $0x8] sm:$0xff]
    %v45 = vld [vmem:[#allocation4 + $0x10] sm:$0xff]
    %v46 = vld [vmem:[#allocation4 + $0x18] sm:$0xff]
    %v47 = vld [vmem:[#allocation2] sm:$0xff]
    %v48 = vld [vmem:[#allocation2 + $0x8] sm:$0xff]
    %v49 = vpack.c.bf16 %v47, %v47
    %v50 = vpack.c.bf16 %v48, %v48
    %v51 = vld [vmem:[%s2] sm:$0x3]
    %v53 = vlaneseq
    %v54 = vshrl.u32 %v53, 7
    %v55 = vsub.s32 0, %v54
    %v56 = vrot.slane %v51, %v55
    %v57 = vlaneseq
    %v58 = vshrl.u32 %v57, 7
    %v59 = vsub.s32 1, %v58
    %v60 = vrot.slane %v51, %v59
    %v65 = vunpack.c.l.b16 %v49
    %v66 = vunpack.c.l.b16 %v50
    %v67 = vpack.c.b16 %v66, %v65
    %v72 = vunpack.c.l.b16 %v43
    %v73 = vunpack.c.h.b16 %v43
    %v74 = vunpack.c.l.b16 %v44
    %v75 = vunpack.c.h.b16 %v44
    %v76 = vunpack.c.l.b16 %v45
    %v77 = vunpack.c.h.b16 %v45
    %v78 = vunpack.c.l.b16 %v46
    %v79 = vunpack.c.h.b16 %v46
    %v80 = vpack.c.b16 %v74, %v72
    %v81 = vpack.c.b16 %v75, %v73
    %v82 = vpack.c.b16 %v78, %v76
    %v83 = vpack.c.b16 %v79, %v77
    %vm88 = vcmask 261120
    %v90 = vsel %vm88, %v67, 0
    %92 = vmatprep.subr.bf16.mxu0 %v81
    %93 = vmatpush1.bf16.msra.mxu0 %v80
    %94 = vmatprep.subr.bf16.mxu0 %v83
    %95 = vmatpush1.bf16.msra.mxu0 %v82
    %96 = vmatprep.subr.bf16.mxu0 0
    %97 = vmatpush1.bf16.msra.mxu0 0
    %98 = vmatprep.subr.bf16.mxu0 0
    %99 = vmatpush1.bf16.msra.mxu0 0
    %100 = vmatprep.subr.bf16.mxu0 0
    %101 = vmatpush1.bf16.msra.mxu0 0
    %102 = vmatprep.subr.bf16.mxu0 0
    %103 = vmatpush1.bf16.msra.mxu0 0
    %104 = vmatprep.subr.bf16.mxu0 0
    %105 = vmatpush1.bf16.msra.mxu0 0
    %106 = vmatprep.subr.bf16.mxu0 0
    %107 = vmatpush1.bf16.msra.mxu0 0
    %108 = vmatprep.subr.bf16.mxu0 0
    %109 = vmatpush1.bf16.msra.mxu0 0
    %110 = vmatprep.subr.bf16.mxu0 0
    %111 = vmatpush1.bf16.msra.mxu0 0
    %112 = vmatprep.subr.bf16.mxu0 0
    %113 = vmatpush1.bf16.msra.mxu0 0
    %114 = vmatprep.subr.bf16.mxu0 0
    %115 = vmatpush1.bf16.msra.mxu0 0
    %116 = vmatprep.subr.bf16.mxu0 0
    %117 = vmatpush1.bf16.msra.mxu0 0
    %118 = vmatprep.subr.bf16.mxu0 0
    %119 = vmatpush1.bf16.msra.mxu0 0
    %120 = vmatprep.subr.bf16.mxu0 0
    %121 = vmatpush1.bf16.msra.mxu0 0
    %122 = vmatprep.subr.bf16.mxu0 0
    %123 = vmatpush1.bf16.msra.mxu0 0
    %124 = vmatprep.mubr.bf16.mxu0 0
    %125 = vmatmul.mubr.bf16.gmra.mrb[0].mxu0 %v90
    %v126 = vpop.f32.mrb[0].mxu0
    %v127 = vadd.f32 %v56, %v126
    %v128 = vpop.f32.mrb[0].mxu0
    %v129 = vadd.f32 %v60, %v128
    %v130 = vpop.f32.mrb[0].mxu0
    %v131 = vadd.f32 %v56, %v130
    %v132 = vpop.f32.mrb[0].mxu0
    %v133 = vadd.f32 %v60, %v132
    %134 = vdwg.mxu0
    %v137 = vrot.slane %v129, 1
    %v138 = vrot.slane %v133, 1
    %v141 = vmul.f32 %v127, %v137
    %v142 = vmul.f32 %v131, %v138
    %vm143 = vcmask 1046528
    %v144 = vsel %vm143, %v141, 0.0
    %145 = vadd.xlane.f32.xlu0 %v144
    %v146 = vpop.xlane.xlu0 %145
    %v147 = vsel %vm143, %v142, 0.0
    %148 = vadd.xlane.f32.xlu0 %v147
    %v149 = vpop.xlane.xlu0 %148
    %v150 = vmul.f32 %v146, 0.25
    %v151 = vmul.f32 %v149, 0.25
    %v152 = vxor.u32 %v150, 2147483648
    %v153 = vxor.u32 %v151, 2147483648
    %v154 = vmul.f32 %v152, 1.442695
    %v155 = vpow.pop %v154
    %v156 = vmul.f32 %v153, 1.442695
    %v157 = vpow.pop %v156
    %v158 = vadd.f32 %v155, 1.0
    %v159 = vadd.f32 %v157, 1.0
    %v160 = vrcp.pop %v158
    %v161 = vmul.f32 1.0, %v160
    %v162 = vrcp.pop %v159
    %v163 = vmul.f32 1.0, %v162
    %164 = vst [vmem:[%s3] sm:$0x3] 0.0
    %v167 = vlaneseq
    %v168 = vand.u32 %v167, 127
    %v169 = vlaneseq
    %v170 = vshrl.u32 %v169, 7
    %v171 = vsub.s32 %v168, %v170
    %v172 = vrot.slane %v161, %v171
    %v173 = vlaneseq
    %v174 = vshrl.u32 %v173, 7
    %v175 = vsub.s32 %v168, %v174
    %v176 = vrot.slane %v163, %v175
    %vm177 = vcmask 1041409
    %v178 = vsel %vm177, %v176, %v172
    %vm180 = vcmask 50176
    %181 = vst.msk [vmem:[%s3] sm:$0x3] %vm180, %v178
    // Predicated region
    $region22: #{binding_field_forward.1} parent=1 // pred_check
      _
    $region23: #{binding_field_forward.1} parent=1 // pred_check_branch
      %183 = sbr.rel (0) target = $region25
    $region24: #{binding_field_forward.1} parent=1 // pred_region
      _
    $region25: #{binding_field_forward.1} parent=1 // pred_fallthru
      _
    // Predicated region
    $region26: #{binding_field_forward.1} parent=1 // pred_check
      _
    $region27: #{binding_field_forward.1} parent=1 // pred_check_branch
      %185 = sbr.rel (0) target = $region29
    $region28: #{binding_field_forward.1} parent=1 // pred_region
      _
    $region29: #{binding_field_forward.1} parent=1 // pred_fallthru
      _
    %186 = vsyncpa [#allocation3], 1
    %187 = vsyncpa [#allocation5], 1

</llo_original>
